<compile_context>
chip_gen: v5e
topology: v5e:2x2
jax: 0.10.0
libtpu: 0.0.40
codegen_flags: <defaults>
</compile_context>

<pallas_src>
import functools

import jax
import jax.numpy as jnp
import numpy as np
from jax.experimental import pallas as pl
from jax.experimental.pallas import tpu as pltpu


def _round_up(a: int, m: int) -> int:
    return ((a + m - 1) // m) * m


def _stpgconv_kernel(eps,
                     s_ref,     # (tile_v, L)   bf16  S tile for this (batch, v-tile)
                     xw_ref,    # (L, 2C)       bf16  x @ Wx^T for this batch (resident)
                     se_ref,    # (tile_v, 2C)  f32   precomputed sape @ Wse^T rows
                     te_ref,    # (1, 2C)       f32   precomputed tape @ Wte^T + bx for this batch
                     gam_ref,   # (1, 2C)       LayerNorm gamma
                     bet_ref,   # (1, 2C)       LayerNorm beta
                     o_ref):    # (tile_v, C)
    # Single MXU matmul per step (bf16 operands, f32 accumulation):
    #   h = S_tile @ (x @ Wx^T)          -> (tile_v, 2C)
    h = jnp.dot(s_ref[...], xw_ref[...], preferred_element_type=jnp.float32)

    # SE / TE (bias folded into TE) adds on the VPU.
    h = h + se_ref[...] + te_ref[...]

    # LayerNorm over the channel (last) dimension, torch default eps.
    mu = jnp.mean(h, axis=-1, keepdims=True)
    hc = h - mu
    var = jnp.mean(hc * hc, axis=-1, keepdims=True)
    hn = hc * jax.lax.rsqrt(var + eps)
    hn = hn * gam_ref[...] + bet_ref[...]

    # GLU gate: chunk along channels, lhs * sigmoid(rhs).
    C = o_ref.shape[-1]
    o_ref[...] = (hn[:, :C] * jax.nn.sigmoid(hn[:, C:])).astype(o_ref.dtype)


def stpgconv_pallas(x, S, sape, tape, wx, bx, wse, wte, gamma, beta, *,
                    eps=1e-5, max_tile_v=256, compute_dtype=jnp.bfloat16,
                    vmem_budget_bytes=12 * 2**20):
    """
    x     : (B, t_size, V, C) float32
    S     : (B, V, t_size*V)  spatio-temporal aggregation matrix
    sape  : (V, d)            spatial absolute position embedding
    tape  : (B, d)            temporal absolute position embedding
    wx    : (2C, C)  bx: (2C,)     -- x_proj   (torch Linear layout)
    wse   : (2C, d)                -- se_proj  (no bias)
    wte   : (2C, d)                -- te_proj  (no bias)
    gamma : (2C,)  beta: (2C,)     -- LayerNorm affine params
    returns (B, V, C)
    """
    B, t_size, V, C = x.shape
    L = t_size * V
    d = sape.shape[-1]
    C2 = 2 * C
    assert S.shape == (B, V, L), S.shape

    # ---- wrapper-side precomputes (tiny; collapse the kernel to one MXU pass/step) ----
    x_r = x.reshape(B, L, C)
    xw = jnp.einsum("blc,kc->blk", x_r, wx)                       # (B, L, 2C) == x @ Wx^T
    SE = (sape @ wse.T).astype(jnp.float32)                       # (V, 2C)
    TE = (tape.reshape(B, d) @ wte.T + bx).reshape(B, 1, C2)      # (B, 1, 2C), bias folded in
    TE = TE.astype(jnp.float32)

    # bf16 streaming operands for the big matmul (f32 accumulation in-kernel).
    S_c = S.astype(compute_dtype)
    xw_c = xw.astype(compute_dtype)

    gam_r = gamma.reshape(1, C2).astype(jnp.float32)
    bet_r = beta.reshape(1, C2).astype(jnp.float32)

    # ---- vertex tiling: minimal padding + VMEM budget ----
    s_bytes = np.dtype(compute_dtype).itemsize
    row_align = 16 if s_bytes < 4 else 8                # bf16 packs 2 rows per sublane
    n_tiles = max(1, -(-V // max_tile_v))               # ceil(V / max_tile_v)
    tile_v = _round_up(-(-V // n_tiles), row_align)     # even split, minimal padding

    def footprint(tv):
        return (2 * tv * L * s_bytes        # streamed S tile (double-buffered)
                + 2 * L * C2 * s_bytes      # per-batch xw (resident, 2 bufs)
                + 2 * tv * C2 * 4           # SE tile
                + 2 * tv * C * 4            # output tile
                + 16 * C2 * 4)              # TE + LN params + slack

    while tile_v > row_align and footprint(tile_v) > vmem_budget_bytes:
        tile_v -= row_align

    V_pad = _round_up(V, tile_v)
    if V_pad != V:
        # NOTE: zero-padded S rows give h = SE(0) + TE_b before LayerNorm; even
        # if that vector is near channel-constant, rsqrt(eps) keeps everything
        # finite, and the rows are sliced off below.  The jnp.pad copy of S is
        # skipped entirely whenever V is a multiple of tile_v.
        S_c = jnp.pad(S_c, ((0, 0), (0, V_pad - V), (0, 0)))
        SE = jnp.pad(SE, ((0, V_pad - V), (0, 0)))

    grid = (B, V_pad // tile_v)

    out = pl.pallas_call(
        functools.partial(_stpgconv_kernel, eps),
        out_shape=jax.ShapeDtypeStruct((B, V_pad, C), x.dtype),
        grid_spec=pltpu.PrefetchScalarGridSpec(
            num_scalar_prefetch=0,
            grid=grid,
            in_specs=[
                # Streamed: one S tile per grid step.
                pl.BlockSpec((None, tile_v, L), lambda b, j: (b, j, 0)),
                # Resident across the inner (vertex-tile) axis: xw for batch b.
                pl.BlockSpec((None, L, C2), lambda b, j: (b, 0, 0)),
                # Precomputed spatial-embedding projection rows for this tile.
                pl.BlockSpec((tile_v, C2), lambda b, j: (j, 0)),
                # Precomputed temporal-embedding projection (+ bias) for batch b.
                pl.BlockSpec((None, 1, C2), lambda b, j: (b, 0, 0)),
                # Resident LayerNorm params.
                pl.BlockSpec((1, C2), lambda b, j: (0, 0)),
                pl.BlockSpec((1, C2), lambda b, j: (0, 0)),
            ],
            out_specs=pl.BlockSpec((None, tile_v, C), lambda b, j: (b, j, 0)),
        ),
        compiler_params=pltpu.CompilerParams(
            dimension_semantics=("parallel", "parallel"),
            vmem_limit_bytes=48 * 2**20),
    )(S_c, xw_c, SE, TE, gam_r, bet_r)

    return out[:, :V, :]


def stpgconv_reference(x, S, sape, tape, wx, bx, wse, wte, gamma, beta, eps=1e-5):
    """Pure-JAX f32 reference of the PyTorch STPGConv.forward (correctness check)."""
    B, t_size, V, C = x.shape
    L = t_size * V
    d = sape.shape[-1]
    xr = x.reshape(B, L, C)
    z = jnp.einsum("bvl,blc->bvc", S, xr)                     # bmm(S, x)
    h = z @ wx.T + bx                                         # x_proj
    SE = sape @ wse.T                                         # (V, 2C)
    TE = (tape.reshape(B, d) @ wte.T)[:, None, :]             # (B, 1, 2C)
    h = h + SE[None, :, :] + TE
    mu = jnp.mean(h, axis=-1, keepdims=True)
    hc = h - mu
    var = jnp.mean(hc * hc, axis=-1, keepdims=True)
    hn = hc * jax.lax.rsqrt(var + eps) * gamma + beta
    lhs, rhs = hn[..., :C], hn[..., C:]
    return lhs * jax.nn.sigmoid(rhs)


def _run_case(key, B, t_size, V, C, d):
    ks = jax.random.split(key, 10)
    x = jax.random.normal(ks[0], (B, t_size, V, C), dtype=jnp.float32)
    S = jax.random.normal(ks[1], (B, V, t_size * V), dtype=jnp.float32) * 0.1
    sape = jax.random.normal(ks[2], (V, d), dtype=jnp.float32)
    tape = jax.random.normal(ks[3], (B, d), dtype=jnp.float32)

    # Parameters in torch layouts.
    wx = jax.random.normal(ks[4], (2 * C, C), dtype=jnp.float32) * 0.1
    bx = jax.random.normal(ks[5], (2 * C,), dtype=jnp.float32) * 0.1
    wse = jax.random.normal(ks[6], (2 * C, d), dtype=jnp.float32) * 0.1
    wte = jax.random.normal(ks[7], (2 * C, d), dtype=jnp.float32) * 0.1
    gamma = jnp.ones((2 * C,), dtype=jnp.float32) \
        + 0.1 * jax.random.normal(ks[8], (2 * C,), dtype=jnp.float32)
    beta = 0.1 * jax.random.normal(ks[9], (2 * C,), dtype=jnp.float32)

    out = jax.block_until_ready(
        stpgconv_pallas(x, S, sape, tape, wx, bx, wse, wte, gamma, beta))
    ref = jax.block_until_ready(
        stpgconv_reference(x, S, sape, tape, wx, bx, wse, wte, gamma, beta))

    assert out.shape == (B, V, C), out.shape
    # bf16 streamed operands with f32 accumulation (+ the S@(x@Wx) reassociation)
    # -> relaxed tolerance vs the pure-f32 reference.
    np.testing.assert_allclose(np.asarray(out), np.asarray(ref), rtol=5e-2, atol=5e-2)


if __name__ == "__main__":
    key = jax.random.PRNGKey(0)
    k1, k2 = jax.random.split(key)

    # Small shapes consistent with STPGConv: B=2, t_size=3, V=32, C=32, d=8
    # (V a multiple of the tile -> no-padding path).
    _run_case(k1, B=2, t_size=3, V=32, C=32, d=8)
    # Ragged-V case (V=24) to exercise the minimal-padding path.
    _run_case(k2, B=2, t_size=3, V=24, C=16, d=8)

    print("KERNEL_OK")
</pallas_src>

<mosaic_0001>
module attributes {stable_mosaic.version = 11 : i64} {
  func.func @_stpgconv_kernel(%arg0: i32, %arg1: i32, %arg2: memref<1x32x96xbf16, #tpu.memory_space<vmem>>, %arg3: memref<1x96x64xbf16, #tpu.memory_space<vmem>>, %arg4: memref<32x64xf32, #tpu.memory_space<vmem>>, %arg5: memref<1x1x64xf32, #tpu.memory_space<vmem>>, %arg6: memref<1x64xf32, #tpu.memory_space<vmem>>, %arg7: memref<1x64xf32, #tpu.memory_space<vmem>>, %arg8: memref<1x32x32xf32, #tpu.memory_space<vmem>>) attributes {dimension_semantics = [#tpu.dimension_semantics<parallel>, #tpu.dimension_semantics<parallel>], iteration_bounds = array<i64: 2, 1>, scalar_prefetch = 0 : i64, scratch_operands = 0 : i64, tpu.core_type = #tpu.core_type<tc>, window_params = [{transform_indices = @transform_0, window_bounds = array<i64: 1, 32, 96>}, {transform_indices = @transform_1, window_bounds = array<i64: 1, 96, 64>}, {transform_indices = @transform_2, window_bounds = array<i64: 32, 64>}, {transform_indices = @transform_3, window_bounds = array<i64: 1, 1, 64>}, {pipeline_mode = #tpu.pipeline_mode<synchronous>, transform_indices = @transform_4, window_bounds = array<i64: 1, 64>}, {pipeline_mode = #tpu.pipeline_mode<synchronous>, transform_indices = @transform_5, window_bounds = array<i64: 1, 64>}, {transform_indices = @transform_6, window_bounds = array<i64: 1, 32, 32>}]} {
    %c0 = arith.constant 0 : index
    %c0_0 = arith.constant 0 : index
    %c0_1 = arith.constant 0 : index
    %0 = vector.load %arg2[%c0, %c0_0, %c0_1] : memref<1x32x96xbf16, #tpu.memory_space<vmem>>, vector<1x32x96xbf16>
    %1 = vector.shape_cast %0 : vector<1x32x96xbf16> to vector<32x96xbf16>
    %c0_2 = arith.constant 0 : index
    %c0_3 = arith.constant 0 : index
    %c0_4 = arith.constant 0 : index
    %2 = vector.load %arg3[%c0_2, %c0_3, %c0_4] : memref<1x96x64xbf16, #tpu.memory_space<vmem>>, vector<1x96x64xbf16>
    %3 = vector.shape_cast %2 : vector<1x96x64xbf16> to vector<96x64xbf16>
    %cst = arith.constant dense<0.000000e+00> : vector<32x64xf32>
    %4 = tpu.matmul %1, %3, %cst {dimension_numbers = #tpu.dot_dimension_numbers<[1], [0], [0], [1], [0, 0, 1, 1], [], []>} : vector<32x96xbf16>, vector<96x64xbf16>, vector<32x64xf32> -> vector<32x64xf32>
    %c0_5 = arith.constant 0 : index
    %c0_6 = arith.constant 0 : index
    %5 = vector.load %arg4[%c0_5, %c0_6] : memref<32x64xf32, #tpu.memory_space<vmem>>, vector<32x64xf32>
    %6 = arith.addf %4, %5 : vector<32x64xf32>
    %c0_7 = arith.constant 0 : index
    %c0_8 = arith.constant 0 : index
    %c0_9 = arith.constant 0 : index
    %7 = vector.load %arg5[%c0_7, %c0_8, %c0_9] : memref<1x1x64xf32, #tpu.memory_space<vmem>>, vector<1x1x64xf32>
    %8 = vector.shape_cast %7 : vector<1x1x64xf32> to vector<1x64xf32>
    %9 = vector.broadcast %8 : vector<1x64xf32> to vector<32x64xf32>
    %10 = arith.addf %6, %9 : vector<32x64xf32>
    %cst_10 = arith.constant dense<0.000000e+00> : vector<32xf32>
    %11 = vector.multi_reduction <add>, %10, %cst_10 [1] : vector<32x64xf32> to vector<32xf32>
    %12 = vector.shape_cast %11 : vector<32xf32> to vector<32x1xf32>
    %cst_11 = arith.constant 6.400000e+01 : f32
    %13 = vector.broadcast %cst_11 : f32 to vector<32x1xf32>
    %14 = arith.divf %12, %13 : vector<32x1xf32>
    %15 = vector.broadcast %14 : vector<32x1xf32> to vector<32x64xf32>
    %16 = arith.subf %10, %15 : vector<32x64xf32>
    %17 = arith.mulf %16, %16 : vector<32x64xf32>
    %cst_12 = arith.constant dense<0.000000e+00> : vector<32xf32>
    %18 = vector.multi_reduction <add>, %17, %cst_12 [1] : vector<32x64xf32> to vector<32xf32>
    %19 = vector.shape_cast %18 : vector<32xf32> to vector<32x1xf32>
    %cst_13 = arith.constant 6.400000e+01 : f32
    %20 = vector.broadcast %cst_13 : f32 to vector<32x1xf32>
    %21 = arith.divf %19, %20 : vector<32x1xf32>
    %cst_14 = arith.constant 9.99999974E-6 : f32
    %22 = vector.broadcast %cst_14 : f32 to vector<32x1xf32>
    %23 = arith.addf %21, %22 : vector<32x1xf32>
    %24 = math.rsqrt %23 : vector<32x1xf32>
    %25 = vector.broadcast %24 : vector<32x1xf32> to vector<32x64xf32>
    %26 = arith.mulf %16, %25 : vector<32x64xf32>
    %c0_15 = arith.constant 0 : index
    %c0_16 = arith.constant 0 : index
    %27 = vector.load %arg6[%c0_15, %c0_16] : memref<1x64xf32, #tpu.memory_space<vmem>>, vector<1x64xf32>
    %28 = vector.broadcast %27 : vector<1x64xf32> to vector<32x64xf32>
    %29 = arith.mulf %26, %28 : vector<32x64xf32>
    %c0_17 = arith.constant 0 : index
    %c0_18 = arith.constant 0 : index
    %30 = vector.load %arg7[%c0_17, %c0_18] : memref<1x64xf32, #tpu.memory_space<vmem>>, vector<1x64xf32>
    %31 = vector.broadcast %30 : vector<1x64xf32> to vector<32x64xf32>
    %32 = arith.addf %29, %31 : vector<32x64xf32>
    %33 = vector.extract_strided_slice %32 {offsets = [0, 0], sizes = [32, 32], strides = [1, 1]} : vector<32x64xf32> to vector<32x32xf32>
    %34 = vector.extract_strided_slice %32 {offsets = [0, 32], sizes = [32, 32], strides = [1, 1]} : vector<32x64xf32> to vector<32x32xf32>
    %35 = arith.negf %34 : vector<32x32xf32>
    %36 = math.exp %35 : vector<32x32xf32>
    %cst_19 = arith.constant 1.000000e+00 : f32
    %37 = vector.broadcast %cst_19 : f32 to vector<32x32xf32>
    %38 = arith.addf %37, %36 : vector<32x32xf32>
    %39 = arith.divf %37, %38 : vector<32x32xf32>
    %40 = arith.mulf %33, %39 : vector<32x32xf32>
    %c0_20 = arith.constant 0 : index
    %c0_21 = arith.constant 0 : index
    %c0_22 = arith.constant 0 : index
    %41 = vector.load %arg8[%c0_20, %c0_21, %c0_22] : memref<1x32x32xf32, #tpu.memory_space<vmem>>, vector<1x32x32xf32>
    %42 = vector.shape_cast %41 : vector<1x32x32xf32> to vector<32x32xf32>
    %43 = vector.shape_cast %40 : vector<32x32xf32> to vector<1x32x32xf32>
    tpu.vector_store %arg8[%c0_20, %c0_21, %c0_22], %43 {strides = array<i32>} : memref<1x32x32xf32, #tpu.memory_space<vmem>>, vector<1x32x32xf32>,
    return
  }
  func.func @transform_0(%arg0: i32, %arg1: i32) -> (i32, i32, i32) {
    %c0_i32 = arith.constant 0 : i32
    %c0_i32_0 = arith.constant 0 : i32
    return %arg0, %arg1, %c0_i32 : i32, i32, i32
  }
  func.func @transform_1(%arg0: i32, %arg1: i32) -> (i32, i32, i32) {
    %c0_i32 = arith.constant 0 : i32
    %c0_i32_0 = arith.constant 0 : i32
    %c0_i32_1 = arith.constant 0 : i32
    return %arg0, %c0_i32, %c0_i32_0 : i32, i32, i32
  }
  func.func @transform_2(%arg0: i32, %arg1: i32) -> (i32, i32) {
    %c0_i32 = arith.constant 0 : i32
    %c0_i32_0 = arith.constant 0 : i32
    return %arg1, %c0_i32 : i32, i32
  }
  func.func @transform_3(%arg0: i32, %arg1: i32) -> (i32, i32, i32) {
    %c0_i32 = arith.constant 0 : i32
    %c0_i32_0 = arith.constant 0 : i32
    %c0_i32_1 = arith.constant 0 : i32
    return %arg0, %c0_i32, %c0_i32_0 : i32, i32, i32
  }
  func.func @transform_4(%arg0: i32, %arg1: i32) -> (i32, i32) {
    %c0_i32 = arith.constant 0 : i32
    %c0_i32_0 = arith.constant 0 : i32
    %c0_i32_1 = arith.constant 0 : i32
    return %c0_i32, %c0_i32_0 : i32, i32
  }
  func.func @transform_5(%arg0: i32, %arg1: i32) -> (i32, i32) {
    %c0_i32 = arith.constant 0 : i32
    %c0_i32_0 = arith.constant 0 : i32
    %c0_i32_1 = arith.constant 0 : i32
    return %c0_i32, %c0_i32_0 : i32, i32
  }
  func.func @transform_6(%arg0: i32, %arg1: i32) -> (i32, i32, i32) {
    %c0_i32 = arith.constant 0 : i32
    %c0_i32_0 = arith.constant 0 : i32
    return %arg0, %arg1, %c0_i32 : i32, i32, i32
  }
}

</mosaic_0001>

<llo_original>
// kernel: tpu_custom_call.1
$region0: #{tpu_custom_call.1}
  #allocation0 [shape = 'u32[]', space=smem, size = 0x4, offset = 0x4, fixed_abs, tag = 'smem constant byte address 0x4 - core index']
  #allocation1 [shape = 'u32[72,128]{1,0:T(1,128)}', space=vmem, size = 0x9000, scoped, tag = 'internal scratch']
  %s0 = inlined_call_operand.vmem [shape: bf16[2,32,96], index: 0, kind: input, shape index: {}]
  %s1 = inlined_call_operand.vmem [shape: bf16[2,96,64], index: 1, kind: input, shape index: {}]
  %s2 = inlined_call_operand.vmem [shape: f32[32,64], index: 2, kind: input, shape index: {}]
  %s3 = inlined_call_operand.vmem [shape: f32[2,1,64], index: 3, kind: input, shape index: {}]
  %s4 = inlined_call_operand.vmem [shape: f32[1,64], index: 4, kind: input, shape index: {}]
  %s5 = inlined_call_operand.vmem [shape: f32[1,64], index: 5, kind: input, shape index: {}]
  %s6 = inlined_call_operand.hbm [shape: f32[2,32,32], index: 6, kind: output, shape index: {}]
  %s7 = sld [smem:[#allocation0]]
  $region57: #{tpu_custom_call.1} parent=0
    _
  %s9 = ssub.s32 1, %s7
  %s10 = scalar_select 0, %s9, %s7
  $region1: #{tpu_custom_call.1} parent=0
    #allocation2 [shape = 'u8[32768]{0}', space=vmem, size = 0x8000, scoped, tag = 'output window, operand 0']
    #allocation3 [shape = 's32[2]{0}', space=sflag, size = 0x8, scoped, tag = 'scoped memory for tpu_custom_call.1']
    %11 = vsyncpa [#allocation3], 0
    %s12 = scalar_lea.sflag [#allocation3], 1
    %13 = vsyncpa %s12, 0
    loop: start=0, step=1, limit=4
    $region2: #{tpu_custom_call.1} parent=1 // loop_pre_header
      _
    $region3: #{tpu_custom_call.1} parent=1 // loop_header
      %s15 = sphi 0, %s19
      %p16 = scmp.ge.s32.totalorder %s15, 4
      %s22 = sphi 0, %s34
      %s23 = sphi 0, %s30
      %s24 = sphi 0, %s22
      %s25 = sphi 0, %s23
      %s26 = sphi 0, %s24
      %s27 = sphi 0, %s25
      %s39 = sphi 0, %s41
      %s42 = sphi 0, %s39
      %s43 = sphi 0, %s42
      %s59 = sphi 0, %s43
      %s65 = sphi 0, %s67
      %s68 = sphi 0, %s65
      %s69 = sphi 0, %s68
      %s85 = sphi 0, %s69
      %s91 = sphi 0, %s93
      %s94 = sphi 0, %s91
      %s95 = sphi 0, %s94
      %s111 = sphi 0, %s95
      %s117 = sphi 0, %s119
      %s120 = sphi 0, %s117
      %s121 = sphi 0, %s120
      %s137 = sphi 0, %s121
      %s141 = sphi 0, %s141
      %s143 = sphi 0, %s141
      %s144 = sphi 0, %s143
      %s158 = sphi 0, %s144
      %s162 = sphi 0, %s162
      %s164 = sphi 0, %s162
      %s165 = sphi 0, %s164
      %s179 = sphi 0, %s165
      %s187 = sphi 0, %s189
      %s190 = sphi 0, %s187
      %s191 = sphi 0, %s190
      %s207 = sphi 0, %s191
    $region4: #{tpu_custom_call.1} parent=1 // loop_header_branch
      %18 = sbr.rel (%p16) target = $region8
    $region5: #{tpu_custom_call.1} parent=1 // loop_body
      %s20 = ssub.s32 %s15, 1
      %s21 = ssub.s32 %s15, 2
      %s28 = sadd.s32 1, %s23
      %p29 = scmp.ge.s32.totalorder %s28, 1
      %s30 = scalar_select %p29, 0, %s28
      %s31 = sadd.s32 1, %s22
      %s32 = scalar_select %p29, %s31, %s22
      %p33 = scmp.ge.s32.totalorder %s32, 2
      %s34 = scalar_select %p33, 0, %s32
      %s35 = ssub.s32 %s22, %s34
      %s36 = ssub.s32 %s23, %s30
      %s37 = sor.u32 %s35, %s36
      %p38 = scmp.eq.s32.totalorder %s37, 0
      %s40 = sadd.s32 %s39, 1
      %s41 = scalar_select %p38, %s39, %s40
      %p44 = pneg %p38
      %p45 = scmp.eq.s32.totalorder %s15, 1
      %p46 = por %p44, %p45
      %p47 = scmp.ne.s32.totalorder %s39, %s42
      %p48 = scmp.eq.s32.totalorder %s15, 0
      %p49 = por %p47, %p48
      %p50 = scmp.ne.s32.totalorder %s39, %s42
      %p51 = scmp.eq.s32.totalorder %s20, 1
      %p52 = por %p50, %p51
      %p53 = scmp.ne.s32.totalorder %s42, %s43
      %p54 = scmp.eq.s32.totalorder %s20, 0
      %p55 = por %p53, %p54
      %p56 = scmp.ne.s32.totalorder %s42, %s43
      %p57 = scmp.eq.s32.totalorder %s21, 1
      %p58 = por %p56, %p57
      %p60 = scmp.ne.s32.totalorder %s43, %s59
      %p61 = scmp.eq.s32.totalorder %s21, 0
      %p62 = por %p60, %p61
      %s63 = ssub.s32 %s22, %s34
      %p64 = scmp.eq.s32.totalorder %s63, 0
      %s66 = sadd.s32 %s65, 1
      %s67 = scalar_select %p64, %s65, %s66
      %p70 = pneg %p64
      %p71 = scmp.eq.s32.totalorder %s15, 1
      %p72 = por %p70, %p71
      %p73 = scmp.ne.s32.totalorder %s65, %s68
      %p74 = scmp.eq.s32.totalorder %s15, 0
      %p75 = por %p73, %p74
      %p76 = scmp.ne.s32.totalorder %s65, %s68
      %p77 = scmp.eq.s32.totalorder %s20, 1
      %p78 = por %p76, %p77
      %p79 = scmp.ne.s32.totalorder %s68, %s69
      %p80 = scmp.eq.s32.totalorder %s20, 0
      %p81 = por %p79, %p80
      %p82 = scmp.ne.s32.totalorder %s68, %s69
      %p83 = scmp.eq.s32.totalorder %s21, 1
      %p84 = por %p82, %p83
      %p86 = scmp.ne.s32.totalorder %s69, %s85
      %p87 = scmp.eq.s32.totalorder %s21, 0
      %p88 = por %p86, %p87
      %s89 = ssub.s32 %s23, %s30
      %p90 = scmp.eq.s32.totalorder %s89, 0
      %s92 = sadd.s32 %s91, 1
      %s93 = scalar_select %p90, %s91, %s92
      %p96 = pneg %p90
      %p97 = scmp.eq.s32.totalorder %s15, 1
      %p98 = por %p96, %p97
      %p99 = scmp.ne.s32.totalorder %s91, %s94
      %p100 = scmp.eq.s32.totalorder %s15, 0
      %p101 = por %p99, %p100
      %p102 = scmp.ne.s32.totalorder %s91, %s94
      %p103 = scmp.eq.s32.totalorder %s20, 1
      %p104 = por %p102, %p103
      %p105 = scmp.ne.s32.totalorder %s94, %s95
      %p106 = scmp.eq.s32.totalorder %s20, 0
      %p107 = por %p105, %p106
      %p108 = scmp.ne.s32.totalorder %s94, %s95
      %p109 = scmp.eq.s32.totalorder %s21, 1
      %p110 = por %p108, %p109
      %p112 = scmp.ne.s32.totalorder %s95, %s111
      %p113 = scmp.eq.s32.totalorder %s21, 0
      %p114 = por %p112, %p113
      %s115 = ssub.s32 %s22, %s34
      %p116 = scmp.eq.s32.totalorder %s115, 0
      %s118 = sadd.s32 %s117, 1
      %s119 = scalar_select %p116, %s117, %s118
      %p122 = pneg %p116
      %p123 = scmp.eq.s32.totalorder %s15, 1
      %p124 = por %p122, %p123
      %p125 = scmp.ne.s32.totalorder %s117, %s120
      %p126 = scmp.eq.s32.totalorder %s15, 0
      %p127 = por %p125, %p126
      %p128 = scmp.ne.s32.totalorder %s117, %s120
      %p129 = scmp.eq.s32.totalorder %s20, 1
      %p130 = por %p128, %p129
      %p131 = scmp.ne.s32.totalorder %s120, %s121
      %p132 = scmp.eq.s32.totalorder %s20, 0
      %p133 = por %p131, %p132
      %p134 = scmp.ne.s32.totalorder %s120, %s121
      %p135 = scmp.eq.s32.totalorder %s21, 1
      %p136 = por %p134, %p135
      %p138 = scmp.ne.s32.totalorder %s121, %s137
      %p139 = scmp.eq.s32.totalorder %s21, 0
      %p140 = por %p138, %p139
      %s142 = sadd.s32 %s141, 1
      %p145 = scmp.eq.s32.totalorder %s15, 1
      %p146 = scmp.ne.s32.totalorder %s141, %s143
      %p147 = scmp.eq.s32.totalorder %s15, 0
      %p148 = por %p146, %p147
      %p149 = scmp.ne.s32.totalorder %s141, %s143
      %p150 = scmp.eq.s32.totalorder %s20, 1
      %p151 = por %p149, %p150
      %p152 = scmp.ne.s32.totalorder %s143, %s144
      %p153 = scmp.eq.s32.totalorder %s20, 0
      %p154 = por %p152, %p153
      %p155 = scmp.ne.s32.totalorder %s143, %s144
      %p156 = scmp.eq.s32.totalorder %s21, 1
      %p157 = por %p155, %p156
      %p159 = scmp.ne.s32.totalorder %s144, %s158
      %p160 = scmp.eq.s32.totalorder %s21, 0
      %p161 = por %p159, %p160
      %s163 = sadd.s32 %s162, 1
      %p166 = scmp.eq.s32.totalorder %s15, 1
      %p167 = scmp.ne.s32.totalorder %s162, %s164
      %p168 = scmp.eq.s32.totalorder %s15, 0
      %p169 = por %p167, %p168
      %p170 = scmp.ne.s32.totalorder %s162, %s164
      %p171 = scmp.eq.s32.totalorder %s20, 1
      %p172 = por %p170, %p171
      %p173 = scmp.ne.s32.totalorder %s164, %s165
      %p174 = scmp.eq.s32.totalorder %s20, 0
      %p175 = por %p173, %p174
      %p176 = scmp.ne.s32.totalorder %s164, %s165
      %p177 = scmp.eq.s32.totalorder %s21, 1
      %p178 = por %p176, %p177
      %p180 = scmp.ne.s32.totalorder %s165, %s179
      %p181 = scmp.eq.s32.totalorder %s21, 0
      %p182 = por %p180, %p181
      %s183 = ssub.s32 %s22, %s34
      %s184 = ssub.s32 %s23, %s30
      %s185 = sor.u32 %s183, %s184
      %p186 = scmp.eq.s32.totalorder %s185, 0
      %s188 = sadd.s32 %s187, 1
      %s189 = scalar_select %p186, %s187, %s188
      %p192 = pneg %p186
      %p193 = scmp.eq.s32.totalorder %s15, 1
      %p194 = por %p192, %p193
      %p195 = scmp.ne.s32.totalorder %s187, %s190
      %p196 = scmp.eq.s32.totalorder %s15, 0
      %p197 = por %p195, %p196
      %p198 = scmp.ne.s32.totalorder %s187, %s190
      %p199 = scmp.eq.s32.totalorder %s20, 1
      %p200 = por %p198, %p199
      %p201 = scmp.ne.s32.totalorder %s190, %s191
      %p202 = scmp.eq.s32.totalorder %s20, 0
      %p203 = por %p201, %p202
      %p204 = scmp.ne.s32.totalorder %s190, %s191
      %p205 = scmp.eq.s32.totalorder %s21, 1
      %p206 = por %p204, %p205
      %p208 = scmp.ne.s32.totalorder %s191, %s207
      %p209 = scmp.eq.s32.totalorder %s21, 0
      %p210 = por %p208, %p209
      %p211 = scmp.le.s32.totalorder 1, %s15
      %p212 = scmp.lt.s32.totalorder %s15, 3
      %p213 = pnand %p211, %p212
      %p214 = pneg %p213
      // Predicated region
      $region9: #{tpu_custom_call.1} parent=5 // pred_check
        _
      $region10: #{tpu_custom_call.1} parent=5 // pred_check_branch
        %216 = sbr.rel (%p213) target = $region12
      $region11: #{tpu_custom_call.1} parent=5 // pred_region
        %s217 = ssub.s32 %s15, 1
        // Predicated region
        $region13: #{tpu_custom_call.1} parent=11 // pred_check
          %p218 = pneg %p107
        $region14: #{tpu_custom_call.1} parent=11 // pred_check_branch
          %220 = sbr.rel (%p218) target = $region16
        $region15: #{tpu_custom_call.1} parent=11 // pred_region
          %s221 = smul.u32 4, %s25
          %p222 = scmp.lt.s32.totalorder %s221, 3
          %s223 = scalar_select %p222, %s221, 3
          %s224 = smul.addr %s223, 8
          %s225 = scalar_lea.vmem %s2, %s224
          %s226 = smul.u32 4, %s25
        $region16: #{tpu_custom_call.1} parent=11 // pred_fallthru
          _
        // Predicated region
        $region17: #{tpu_custom_call.1} parent=11 // pred_check
          %p227 = pneg %p154
        $region18: #{tpu_custom_call.1} parent=11 // pred_check_branch
          %229 = sbr.rel (%p227) target = $region20
        $region19: #{tpu_custom_call.1} parent=11 // pred_region
          _
        $region20: #{tpu_custom_call.1} parent=11 // pred_fallthru
          _
        // Predicated region
        $region21: #{tpu_custom_call.1} parent=11 // pred_check
          %p230 = pneg %p175
        $region22: #{tpu_custom_call.1} parent=11 // pred_check_branch
          %232 = sbr.rel (%p230) target = $region24
        $region23: #{tpu_custom_call.1} parent=11 // pred_region
          _
        $region24: #{tpu_custom_call.1} parent=11 // pred_fallthru
          _
      $region12: #{tpu_custom_call.1} parent=5 // pred_fallthru
        _
      %p233 = scmp.lt.s32.totalorder %s15, 2
      // Predicated region
      $region25: #{tpu_custom_call.1} parent=5 // pred_check
        %p234 = pneg %p233
      $region26: #{tpu_custom_call.1} parent=5 // pred_check_branch
        %236 = sbr.rel (%p234) target = $region28
      $region27: #{tpu_custom_call.1} parent=5 // pred_region
        // Predicated region
        $region29: #{tpu_custom_call.1} parent=27 // pred_check
          %p237 = pneg %p49
        $region30: #{tpu_custom_call.1} parent=27 // pred_check_branch
          %239 = sbr.rel (%p237) target = $region32
        $region31: #{tpu_custom_call.1} parent=27 // pred_region
          %s240 = smul.u32 4, %s23
          %p241 = scmp.lt.s32.totalorder %s22, 1
          %s242 = scalar_select %p241, %s22, 1
          %p243 = scmp.lt.s32.totalorder %s240, 3
          %s244 = scalar_select %p243, %s240, 3
          %s245 = smul.addr %s242, 4
          %s246 = sadd.s32 %s244, %s245
          %s247 = smul.addr %s246, 4
          %s248 = scalar_lea.vmem %s0, %s247
          %s249 = smul.u32 4, %s23
        $region32: #{tpu_custom_call.1} parent=27 // pred_fallthru
          _
        // Predicated region
        $region33: #{tpu_custom_call.1} parent=27 // pred_check
          %p250 = pneg %p75
        $region34: #{tpu_custom_call.1} parent=27 // pred_check_branch
          %252 = sbr.rel (%p250) target = $region36
        $region35: #{tpu_custom_call.1} parent=27 // pred_region
          %p253 = scmp.lt.s32.totalorder %s22, 1
          %s254 = scalar_select %p253, %s22, 1
          %s255 = smul.addr %s254, 12
          %s256 = smul.addr %s255, 4
          %s257 = scalar_lea.vmem %s1, %s256
        $region36: #{tpu_custom_call.1} parent=27 // pred_fallthru
          _
        // Predicated region
        $region37: #{tpu_custom_call.1} parent=27 // pred_check
          %p258 = pneg %p127
        $region38: #{tpu_custom_call.1} parent=27 // pred_check_branch
          %260 = sbr.rel (%p258) target = $region40
        $region39: #{tpu_custom_call.1} parent=27 // pred_region
          %p261 = scmp.lt.s32.totalorder %s22, 1
          %s262 = scalar_select %p261, %s22, 1
          %s263 = scalar_lea.vmem %s3, %s262
        $region40: #{tpu_custom_call.1} parent=27 // pred_fallthru
          _
      $region28: #{tpu_custom_call.1} parent=5 // pred_fallthru
        _
      %p264 = scmp.le.s32.totalorder 1, %s15
      %p265 = scmp.lt.s32.totalorder %s15, 3
      %p266 = pnand %p264, %p265
      %p267 = pneg %p266
      // Predicated region
      $region41: #{tpu_custom_call.1} parent=5 // pred_check
        _
      $region42: #{tpu_custom_call.1} parent=5 // pred_check_branch
        %269 = sbr.rel (%p266) target = $region44
      $region43: #{tpu_custom_call.1} parent=5 // pred_region
        %s270 = ssub.s32 %s15, 1
        %s271 = smul.u32 4, %s25
        %p272 = scmp.lt.s32.totalorder %s24, 1
        %s273 = scalar_select %p272, %s24, 1
        %p274 = scmp.lt.s32.totalorder %s271, 3
        %s275 = scalar_select %p274, %s271, 3
        %s276 = smul.addr %s273, 4
        %s277 = sadd.s32 %s275, %s276
        %s278 = smul.addr %s277, 4
        %s279 = scalar_lea.vmem %s0, %s278
        %p280 = pneg %p55
        %p281 = pneg %p52
        %p282 = scmp.lt.s32.totalorder %s24, 1
        %s283 = scalar_select %p282, %s24, 1
        %s284 = smul.addr %s283, 12
        %s285 = smul.addr %s284, 4
        %s286 = scalar_lea.vmem %s1, %s285
        %p287 = pneg %p81
        %p288 = pneg %p78
        %s289 = smul.u32 4, %s25
        %p290 = scmp.lt.s32.totalorder %s289, 3
        %s291 = scalar_select %p290, %s289, 3
        %s292 = smul.addr %s291, 8
        %s293 = scalar_lea.vmem %s2, %s292
        %p294 = pneg %p107
        %p295 = pneg %p104
        %p296 = scmp.lt.s32.totalorder %s24, 1
        %s297 = scalar_select %p296, %s24, 1
        %s298 = scalar_lea.vmem %s3, %s297
        %p299 = pneg %p133
        %p300 = pneg %p130
        %p301 = pneg %p154
        %p302 = pneg %p151
        %p303 = pneg %p175
        %p304 = pneg %p172
        %p305 = pneg %p203
        %p306 = pneg %p200
        %s307 = sand.u32 %s190, 1
        %s308 = scalar_lea.sflag [#allocation3], %s307
        %s309 = sand.u32 %s190, 1
        %s310 = smul.addr %s309, 32
        %s311 = scalar_lea.vmem [#allocation2], %s310
        %s312 = smul.u32 4, %s25
        %p313 = scmp.lt.s32.totalorder %s24, 1
        %s314 = scalar_select %p313, %s24, 1
        %p315 = scmp.lt.s32.totalorder %s312, 3
        %s316 = scalar_select %p315, %s312, 3
        %s317 = smul.addr %s314, 4
        %s318 = sadd.s32 %s316, %s317
        %s319 = smul.addr %s318, 4
        %s320 = scalar_lea.vmem %s0, %s319
        %s321 = smul.u32 4, %s25
        %p322 = scmp.lt.s32.totalorder %s24, 1
        %s323 = scalar_select %p322, %s24, 1
        %s324 = smul.addr %s323, 12
        %s325 = smul.addr %s324, 4
        %s326 = scalar_lea.vmem %s1, %s325
        %s327 = smul.u32 4, %s25
        %p328 = scmp.lt.s32.totalorder %s327, 3
        %s329 = scalar_select %p328, %s327, 3
        %s330 = smul.addr %s329, 8
        %s331 = scalar_lea.vmem %s2, %s330
        %s332 = smul.u32 4, %s25
        %p333 = scmp.lt.s32.totalorder %s24, 1
        %s334 = scalar_select %p333, %s24, 1
        %s335 = scalar_lea.vmem %s3, %s334
        %s336 = smul.u32 4, %s25
        %v338 = vld [vmem:[%s320] sm:$0xf]
        %v339 = vld [vmem:[%s320 + $0x4] sm:$0xf]
        %v340 = vld [vmem:[%s320 + $0x8] sm:$0xf]
        %v341 = vld [vmem:[%s320 + $0xc] sm:$0xf]
        %v342 = vld [vmem:[%s326] sm:$0xf]
        %v343 = vld [vmem:[%s326 + $0x4] sm:$0xf]
        %v344 = vld [vmem:[%s326 + $0x8] sm:$0xf]
        %v345 = vld [vmem:[%s326 + $0xc] sm:$0xf]
        %v346 = vld [vmem:[%s326 + $0x10] sm:$0xf]
        %v347 = vld [vmem:[%s326 + $0x14] sm:$0xf]
        %v348 = vld [vmem:[%s326 + $0x18] sm:$0xf]
        %v349 = vld [vmem:[%s326 + $0x1c] sm:$0xf]
        %v350 = vld [vmem:[%s326 + $0x20] sm:$0xf]
        %v351 = vld [vmem:[%s326 + $0x24] sm:$0xf]
        %v352 = vld [vmem:[%s326 + $0x28] sm:$0xf]
        %v353 = vld [vmem:[%s326 + $0x2c] sm:$0xf]
        %v354 = vld [vmem:[%s331] sm:$0xff]
        %v355 = vld [vmem:[%s331 + $0x8] sm:$0xff]
        %v356 = vld [vmem:[%s331 + $0x10] sm:$0xff]
        %v357 = vld [vmem:[%s331 + $0x18] sm:$0xff]
        %v362 = vunpack.c.l.b16 %v338
        %v363 = vunpack.c.l.b16 %v339
        %v364 = vunpack.c.l.b16 %v340
        %v365 = vunpack.c.l.b16 %v341
        %v366 = vpack.c.b16 %v363, %v362
        %v367 = vpack.c.b16 %v365, %v364
        %v380 = vunpack.c.l.b16 %v342
        %v381 = vunpack.c.l.b16 %v343
        %v382 = vunpack.c.l.b16 %v344
        %v383 = vunpack.c.l.b16 %v345
        %v384 = vunpack.c.l.b16 %v346
        %v385 = vunpack.c.l.b16 %v347
        %v386 = vunpack.c.l.b16 %v348
        %v387 = vunpack.c.l.b16 %v349
        %v388 = vunpack.c.l.b16 %v350
        %v389 = vunpack.c.l.b16 %v351
        %v390 = vunpack.c.l.b16 %v352
        %v391 = vunpack.c.l.b16 %v353
        %v392 = vpack.c.b16 %v381, %v380
        %v393 = vpack.c.b16 %v383, %v382
        %v394 = vpack.c.b16 %v385, %v384
        %v395 = vpack.c.b16 %v387, %v386
        %v396 = vpack.c.b16 %v389, %v388
        %v397 = vpack.c.b16 %v391, %v390
        %vm404 = vcmask 785408
        %v406 = vsel %vm404, %v366, 0
        %v409 = vsel %vm404, %v367, 0
        %411 = vmatpush.bf16.msra.mxu0 0
        %412 = vmatpush.bf16.msra.mxu0 0
        %413 = vmatpush.bf16.msra.mxu0 %v397
        %414 = vmatpush.bf16.msra.mxu0 %v396
        %415 = vmatpush.bf16.msra.mxu0 %v395
        %416 = vmatpush.bf16.msra.mxu0 %v394
        %417 = vmatpush.bf16.msra.mxu0 %v393
        %418 = vmatpush.bf16.msra.mxu0 %v392
        %419 = vmatmul.bf16.gmra.mxu0 %v406
        %v420 = vpop.f32.mrf.mxu0
        %v421 = vadd.f32 %v354, %v420
        %v422 = vpop.f32.mrf.mxu0
        %v423 = vadd.f32 %v355, %v422
        %424 = vmatmul.bf16.gmra.mxu0 %v409
        %v425 = vpop.f32.mrf.mxu0
        %v426 = vadd.f32 %v356, %v425
        %v427 = vpop.f32.mrf.mxu0
        %v428 = vadd.f32 %v357, %v427
        %429 = vdwg.mxu0
        %v430 = vld [vmem:[%s335] sm:$0x1]
        %v432 = vperm.slane %v430, 0
        %v434 = vadd.f32 %v421, %v432
        %v435 = vadd.f32 %v423, %v432
        %v436 = vadd.f32 %v426, %v432
        %v437 = vadd.f32 %v428, %v432
        %vm438 = vcmask 523264
        %v439 = vsel %vm438, %v434, 0.0
        %440 = vadd.xlane.f32.xlu0 %v439
        %v441 = vpop.xlane.xlu0 %440
        %v442 = vsel %vm438, %v435, 0.0
        %443 = vadd.xlane.f32.xlu0 %v442
        %v444 = vpop.xlane.xlu0 %443
        %v445 = vsel %vm438, %v436, 0.0
        %446 = vadd.xlane.f32.xlu0 %v445
        %v447 = vpop.xlane.xlu0 %446
        %v448 = vsel %vm438, %v437, 0.0
        %449 = vadd.xlane.f32.xlu0 %v448
        %v450 = vpop.xlane.xlu0 %449
        %v451 = vrcp.pop 64.0
        %v452 = vmul.f32 64.0, %v451
        %v453 = vsub.f32 1.0, %v452
        %v454 = vmul.f32 %v451, %v453
        %v455 = vadd.f32 %v451, %v454
        %vm456 = vweird.f32 %v451
        %v457 = vsel %vm456, %v451, %v455
        %v458 = vmul.f32 %v441, %v457
        %v459 = vmul.f32 %v444, %v457
        %v460 = vmul.f32 %v447, %v457
        %v461 = vmul.f32 %v450, %v457
        %v462 = vsub.f32 %v434, %v458
        %v463 = vsub.f32 %v435, %v459
        %v464 = vsub.f32 %v436, %v460
        %v465 = vsub.f32 %v437, %v461
        %v466 = vmul.f32 %v462, %v462
        %v467 = vmul.f32 %v463, %v463
        %v468 = vmul.f32 %v464, %v464
        %v469 = vmul.f32 %v465, %v465
        %v470 = vsel %vm438, %v466, 0.0
        %471 = vadd.xlane.f32.xlu0 %v470
        %v472 = vpop.xlane.xlu0 %471
        %v473 = vsel %vm438, %v467, 0.0
        %474 = vadd.xlane.f32.xlu0 %v473
        %v475 = vpop.xlane.xlu0 %474
        %v476 = vsel %vm438, %v468, 0.0
        %477 = vadd.xlane.f32.xlu0 %v476
        %v478 = vpop.xlane.xlu0 %477
        %v479 = vsel %vm438, %v469, 0.0
        %480 = vadd.xlane.f32.xlu0 %v479
        %v481 = vpop.xlane.xlu0 %480
        %v482 = vmul.f32 %v472, %v457
        %v483 = vmul.f32 %v475, %v457
        %v484 = vmul.f32 %v478, %v457
        %v485 = vmul.f32 %v481, %v457
        %v486 = vadd.f32 %v482, 1e-05
        %v487 = vadd.f32 %v483, 1e-05
        %v488 = vadd.f32 %v484, 1e-05
        %v489 = vadd.f32 %v485, 1e-05
        %v490 = vrsqrt.pop %v486
        %v491 = vmul.f32 %v490, %v486
        %v492 = vmul.f32 %v491, %v490
        %v493 = vmul.f32 0.5, %v492
        %v494 = vsub.f32 1.5, %v493
        %v495 = vmul.f32 %v490, %v494
        %vm496 = vweird.f32 %v486
        %vm497 = vweird.f32 %v490
        %vm498 = vmor %vm496, %vm497
        %v499 = vsel %vm498, %v490, %v495
        %v500 = vrsqrt.pop %v487
        %v501 = vmul.f32 %v500, %v487
        %v502 = vmul.f32 %v501, %v500
        %v503 = vmul.f32 0.5, %v502
        %v504 = vsub.f32 1.5, %v503
        %v505 = vmul.f32 %v500, %v504
        %vm506 = vweird.f32 %v487
        %vm507 = vweird.f32 %v500
        %vm508 = vmor %vm506, %vm507
        %v509 = vsel %vm508, %v500, %v505
        %v510 = vrsqrt.pop %v488
        %v511 = vmul.f32 %v510, %v488
        %v512 = vmul.f32 %v511, %v510
        %v513 = vmul.f32 0.5, %v512
        %v514 = vsub.f32 1.5, %v513
        %v515 = vmul.f32 %v510, %v514
        %vm516 = vweird.f32 %v488
        %vm517 = vweird.f32 %v510
        %vm518 = vmor %vm516, %vm517
        %v519 = vsel %vm518, %v510, %v515
        %v520 = vrsqrt.pop %v489
        %v521 = vmul.f32 %v520, %v489
        %v522 = vmul.f32 %v521, %v520
        %v523 = vmul.f32 0.5, %v522
        %v524 = vsub.f32 1.5, %v523
        %v525 = vmul.f32 %v520, %v524
        %vm526 = vweird.f32 %v489
        %vm527 = vweird.f32 %v520
        %vm528 = vmor %vm526, %vm527
        %v529 = vsel %vm528, %v520, %v525
        %v530 = vmul.f32 %v462, %v499
        %v531 = vmul.f32 %v463, %v509
        %v532 = vmul.f32 %v464, %v519
        %v533 = vmul.f32 %v465, %v529
        %v534 = vld [vmem:[%s4] sm:$0x1]
        %v536 = vperm.slane %v534, 0
        %v538 = vmul.f32 %v530, %v536
        %v539 = vmul.f32 %v531, %v536
        %v540 = vmul.f32 %v532, %v536
        %v541 = vmul.f32 %v533, %v536
        %v542 = vld [vmem:[%s5] sm:$0x1]
        %v544 = vperm.slane %v542, 0
        %v546 = vadd.f32 %v538, %v544
        %v547 = vadd.f32 %v539, %v544
        %v548 = vadd.f32 %v540, %v544
        %v549 = vadd.f32 %v541, %v544
        %v550 = vxor.u32 %v546, 2147483648
        %v551 = vxor.u32 %v547, 2147483648
        %v552 = vxor.u32 %v548, 2147483648
        %v553 = vxor.u32 %v549, 2147483648
        %v554 = vmul.f32 %v550, 1.442695
        %v555 = vpow.pop %v554
        %v556 = vmul.f32 %v551, 1.442695
        %v557 = vpow.pop %v556
        %v558 = vmul.f32 %v552, 1.442695
        %v559 = vpow.pop %v558
        %v560 = vmul.f32 %v553, 1.442695
        %v561 = vpow.pop %v560
        %v562 = vadd.f32 %v555, 1.0
        %v563 = vadd.f32 %v557, 1.0
        %v564 = vadd.f32 %v559, 1.0
        %v565 = vadd.f32 %v561, 1.0
        %v566 = vrcp.pop %v562
        %v567 = vmul.f32 %v562, %v566
        %v568 = vsub.f32 1.0, %v567
        %v569 = vmul.f32 %v566, %v568
        %v570 = vadd.f32 %v566, %v569
        %vm571 = vweird.f32 %v562
        %vm572 = vweird.f32 %v566
        %vm573 = vmor %vm571, %vm572
        %v574 = vsel %vm573, %v566, %v570
        %v575 = vand.u32 2147483647, %v562
        %vm576 = vcmp.eq.f32.partialorder %v575, 8.507059e+37
        %v577 = vand.u32 %v562, 2147483648
        %v578 = vor.u32 1.1754944e-38, %v577
        %v579 = vsel %vm576, %v578, %v574
        %v580 = vmul.f32 1.0, %v579
        %v581 = vrcp.pop %v563
        %v582 = vmul.f32 %v563, %v581
        %v583 = vsub.f32 1.0, %v582
        %v584 = vmul.f32 %v581, %v583
        %v585 = vadd.f32 %v581, %v584
        %vm586 = vweird.f32 %v563
        %vm587 = vweird.f32 %v581
        %vm588 = vmor %vm586, %vm587
        %v589 = vsel %vm588, %v581, %v585
        %v590 = vand.u32 2147483647, %v563
        %vm591 = vcmp.eq.f32.partialorder %v590, 8.507059e+37
        %v592 = vand.u32 %v563, 2147483648
        %v593 = vor.u32 1.1754944e-38, %v592
        %v594 = vsel %vm591, %v593, %v589
        %v595 = vmul.f32 1.0, %v594
        %v596 = vrcp.pop %v564
        %v597 = vmul.f32 %v564, %v596
        %v598 = vsub.f32 1.0, %v597
        %v599 = vmul.f32 %v596, %v598
        %v600 = vadd.f32 %v596, %v599
        %vm601 = vweird.f32 %v564
        %vm602 = vweird.f32 %v596
        %vm603 = vmor %vm601, %vm602
        %v604 = vsel %vm603, %v596, %v600
        %v605 = vand.u32 2147483647, %v564
        %vm606 = vcmp.eq.f32.partialorder %v605, 8.507059e+37
        %v607 = vand.u32 %v564, 2147483648
        %v608 = vor.u32 1.1754944e-38, %v607
        %v609 = vsel %vm606, %v608, %v604
        %v610 = vmul.f32 1.0, %v609
        %v611 = vrcp.pop %v565
        %v612 = vmul.f32 %v565, %v611
        %v613 = vsub.f32 1.0, %v612
        %v614 = vmul.f32 %v611, %v613
        %v615 = vadd.f32 %v611, %v614
        %vm616 = vweird.f32 %v565
        %vm617 = vweird.f32 %v611
        %vm618 = vmor %vm616, %vm617
        %v619 = vsel %vm618, %v611, %v615
        %v620 = vand.u32 2147483647, %v565
        %vm621 = vcmp.eq.f32.partialorder %v620, 8.507059e+37
        %v622 = vand.u32 %v565, 2147483648
        %v623 = vor.u32 1.1754944e-38, %v622
        %v624 = vsel %vm621, %v623, %v619
        %v625 = vmul.f32 1.0, %v624
        %630 = vrot.lane.b32.xlu0 %v580, 96
        %v631 = vpop.permute.xlu0 %630
        %632 = vrot.lane.b32.xlu0 %v595, 96
        %v633 = vpop.permute.xlu0 %632
        %634 = vrot.lane.b32.xlu0 %v610, 96
        %v635 = vpop.permute.xlu0 %634
        %636 = vrot.lane.b32.xlu0 %v625, 96
        %v637 = vpop.permute.xlu0 %636
        %v642 = vmul.f32 %v546, %v631
        %v643 = vmul.f32 %v547, %v633
        %v644 = vmul.f32 %v548, %v635
        %v645 = vmul.f32 %v549, %v637
        %vm646 = vcmask 261120
        %647 = vst.msk [vmem:[%s311] sm:$0xff] %vm646, %v642
        %648 = vst.msk [vmem:[%s311 + $0x8] sm:$0xff] %vm646, %v643
        %649 = vst.msk [vmem:[%s311 + $0x10] sm:$0xff] %vm646, %v644
        %650 = vst.msk [vmem:[%s311 + $0x18] sm:$0xff] %vm646, %v645
        %s651 = sand.u32 %s190, 1
        %s652 = scalar_lea.sflag [#allocation3], %s651
        %s653 = sand.u32 %s190, 1
        %s654 = smul.addr %s653, 32
        %s655 = scalar_lea.vmem [#allocation2], %s654
        // Predicated region
        $region45: #{tpu_custom_call.1} parent=43 // pred_check
          %p656 = pneg %p200
        $region46: #{tpu_custom_call.1} parent=43 // pred_check_branch
          %658 = sbr.rel (%p656) target = $region48
        $region47: #{tpu_custom_call.1} parent=43 // pred_region
          %s659 = smul.u32 4, %s25
          %661 = vsyncadd %s652, 0
          %s662 = smul.addr %s24, 4
          %s663 = sadd.s32 %s659, %s662
          %s664 = smul.addr %s663, 8
          %s665 = scalar_lea.hbm %s6, %s664
          %s666 = sshll.u32 %s655, 4
          %s667 = int_to_ptr.vmem [resolvable:$true] %s666
          %s668 = sshll.u32 %s665, 4
          %s669 = int_to_ptr.hbm [resolvable:$true] %s668
          %674 = dma.vmem_to_hbm [thread:$0]  %s667, 512, %s669, %s652, 128, 128, 8
        $region48: #{tpu_custom_call.1} parent=43 // pred_fallthru
          _
      $region44: #{tpu_custom_call.1} parent=5 // pred_fallthru
        _
      %p675 = scmp.le.s32.totalorder 2, %s15
      // Predicated region
      $region49: #{tpu_custom_call.1} parent=5 // pred_check
        %p676 = pneg %p675
      $region50: #{tpu_custom_call.1} parent=5 // pred_check_branch
        %678 = sbr.rel (%p676) target = $region52
      $region51: #{tpu_custom_call.1} parent=5 // pred_region
        %s679 = ssub.s32 %s15, 2
        // Predicated region
        $region53: #{tpu_custom_call.1} parent=51 // pred_check
          %p680 = pneg %p206
        $region54: #{tpu_custom_call.1} parent=51 // pred_check_branch
          %682 = sbr.rel (%p680) target = $region56
        $region55: #{tpu_custom_call.1} parent=51 // pred_region
          %s683 = sand.u32 %s191, 1
          %s684 = scalar_lea.sflag [#allocation3], %s683
          %s685 = sand.u32 %s191, 1
          %s686 = smul.addr %s685, 32
          %s687 = scalar_lea.vmem [#allocation2], %s686
          %689 = dma.done %s684, 512
        $region56: #{tpu_custom_call.1} parent=51 // pred_fallthru
          _
      $region52: #{tpu_custom_call.1} parent=5 // pred_fallthru
        _
    $region6: #{tpu_custom_call.1} parent=1 // loop_footer
      %s19 = sadd.s32 1, %s15
    $region7: #{tpu_custom_call.1} parent=1 // loop_footer_branch
      %14 = sbr.rel target = $region3
    $region8: #{tpu_custom_call.1} parent=1 // loop_exit
      _
    %690 = vsyncpa [#allocation3], 1
    %s691 = scalar_lea.sflag [#allocation3], 1
    %692 = vsyncpa %s691, 1

</llo_original>
